<compile_context>
chip_gen: v7x
topology: tpu7x:2x2x1
jax: 0.10.0
libtpu: 0.0.40
codegen_flags: <defaults>
</compile_context>

<pallas_src>
import numpy as np
import jax
import jax.numpy as jnp
from jax import lax
from jax.experimental import pallas as pl
from jax.experimental.pallas import tpu as pltpu

# ----------------------------- model hyper-params (scaled down) --------------
REDUCE_DIM = 32          # original: 256
CLASSES = 2
C2, C3, C4 = 16, 32, 64  # original: 512, 1024, 2048
FEA_DIM = C2 + C3        # original: 1024 + 512
PPM_SCALES = [8, 4, 2]   # original: [60, 30, 15, 8]
ZOOM_FACTOR = 8
FEAT_HW = 8              # backbone feature spatial size
HW = FEAT_HW * FEAT_HW
COSINE_EPS = 1e-7
BF16 = jnp.bfloat16


def _full(shape):
    """Full-array BlockSpec for a grid=(1,) pallas_call."""
    zeros = (0,) * len(shape)
    return pl.BlockSpec(shape, lambda i, z=zeros: z)


# ----------------------------- pltpu.roll direction probe ---------------------
_ROLL_FACTOR = None


def _probe_kernel(x_ref, o_ref):
    o_ref[...] = pltpu.roll(x_ref[...], shift=1, axis=1)


def _roll_factor():
    """Resolve pltpu.roll's direction once, so shifted[p] == x[p + d] is
    obtained with shift = _roll_factor() * d (sign-convention safe)."""
    global _ROLL_FACTOR
    if _ROLL_FACTOR is None:
        x = jnp.arange(128, dtype=jnp.float32).reshape(1, 128)
        y = pl.pallas_call(
            _probe_kernel,
            out_shape=jax.ShapeDtypeStruct((1, 128), jnp.float32),
        )(x)
        _ROLL_FACTOR = 1 if abs(float(y[0, 0]) - 1.0) < 0.5 else -1
    return _ROLL_FACTOR


# ----------------------------- the fused PFENet kernel ------------------------
def _pfenet_kernel(x_ref, mask_ref, wb2_ref, wb3_ref, wb4_ref, wdq_ref, wds_ref,
                   wim_ref, wam_ref, wap_ref, wc3_ref, wres1_ref, wcls_ref,
                   bcls_ref, tap_ref, pool_ref, down_ref, up_ref, sel_ref,
                   blk_ref, out_ref, inner_ref):
    lanes = x_ref.shape[-1]
    shot = mask_ref.shape[0]
    nb = sel_ref.shape[1]
    rf = _roll_factor()
    R = REDUCE_DIM

    def relu(v):
        return jnp.maximum(v, 0.0)

    def mm(w_bf, x):                       # (Co,Ci) bf16 @ (Ci,lanes) -> f32
        return jnp.dot(w_bf, x.astype(BF16), preferred_element_type=jnp.float32)

    def conv3x3(x, w_fused, tmask, wb):
        """x:(Cin,lanes) f32, w_fused:(Cout,9*Cin) bf16, tmask:(9,lanes) f32.
        9 lane-rolls + validity masks, then ONE tap-fused MXU matmul."""
        parts = []
        k = 0
        for dy in (-1, 0, 1):
            for dx in (-1, 0, 1):
                d = dy * wb + dx
                shifted = x if d == 0 else pltpu.roll(
                    x, shift=(rf * d) % lanes, axis=1)
                parts.append((shifted * tmask[k:k + 1, :]).astype(BF16))
                k += 1
        xstack = jnp.concatenate(parts, axis=0)           # (9*Cin, lanes) bf16
        return jnp.dot(w_fused, xstack, preferred_element_type=jnp.float32)

    wb2, wb3, wb4 = wb2_ref[...], wb3_ref[...], wb4_ref[...]

    def stem23(g):
        # TODO(synk): synthetic 1x1-projection stem in place of ResNet layer2/3.
        f2 = relu(mm(wb2, x_ref[g]))
        f3 = relu(mm(wb3, f2))
        return f2, f3

    # ---- query branch --------------------------------------------------------
    q2, q3 = stem23(0)
    q4 = relu(mm(wb4, q3))                                           # (C4, lanes)
    query_feat = relu(mm(wdq_ref[...], jnp.concatenate([q3, q2], axis=0)))
    qn = jnp.sqrt(jnp.sum(q4 * q4, axis=0, keepdims=True))           # (1, lanes)

    bsel = sel_ref[0]                                                # (B, lanes)
    blk = blk_ref[...]                                               # block-diag add-mask
    ones_c = jnp.ones((C4, lanes), jnp.float32)

    gap = [jnp.zeros((R, 1), jnp.float32) for _ in range(nb)]
    corr_sum = jnp.zeros((1, lanes), jnp.float32)

    # ---- support branch: mask*, layer4, down_supp, GAP, cosine prior ---------
    for i in range(shot):
        s2, s3 = stem23(1 + i)
        m = mask_ref[i]                                              # (1, lanes) f32
        s4 = relu(mm(wb4, s3 * m))                                   # masked "layer4"
        supp = relu(mm(wds_ref[...], jnp.concatenate([s3, s2], axis=0)))
        sm = supp * m
        s_corr = s4 * m
        # cosine prior (f32 MXU matmuls), per-batch max / min-max via masks
        sim = lax.dot_general(s_corr, q4, (((0,), (0,)), ((), ())),
                              preferred_element_type=jnp.float32)    # (s, q)
        sn = jnp.sqrt(lax.dot_general(s_corr * s_corr, ones_c,
                                      (((0,), (0,)), ((), ())),
                                      preferred_element_type=jnp.float32))
        simn = sim * pl.reciprocal(sn * qn + COSINE_EPS, approx=True)
        cq = jnp.max(simn + blk, axis=0, keepdims=True)              # (1, lanes)
        for b in range(nb):
            selb = bsel[b:b + 1, :]
            area = jnp.sum(m * selb, axis=1, keepdims=True) + 0.0005
            gap[b] = gap[b] + jnp.sum(sm * selb, axis=1, keepdims=True) / area
            mn = jnp.min(jnp.where(selb > 0., cq, 1e30), axis=1, keepdims=True)
            mx = jnp.max(jnp.where(selb > 0., cq, -1e30), axis=1, keepdims=True)
            corr_sum = corr_sum + jnp.where(
                selb > 0., (cq - mn) / (mx - mn + COSINE_EPS), 0.)

    inv_shot = 1.0 / shot
    gap = [g * inv_shot for g in gap]
    corr = corr_sum * inv_shot                                       # (1, lanes)

    # ---- pyramid decoder (scales sequentially coupled via alpha) -------------
    pyr = []
    prev_up = None
    for s, bin_ in enumerate(PPM_SCALES):
        tmask = tap_ref[s]                                           # (9, lanes)
        sel_s = sel_ref[s]
        if bin_ == FEAT_HW:
            qbin, corr_bin = query_feat, corr
        else:
            qbin = jnp.dot(query_feat.astype(BF16), pool_ref[s - 1],
                           preferred_element_type=jnp.float32)
            corr_bin = jnp.dot(corr.astype(BF16), down_ref[s - 1],
                               preferred_element_type=jnp.float32)
        supp_bin = jnp.zeros((R, lanes), jnp.float32)
        for b in range(nb):
            supp_bin = supp_bin + gap[b] * sel_s[b:b + 1, :]
        xcat = jnp.concatenate([qbin, supp_bin, corr_bin], axis=0).astype(BF16)
        merge = relu(jnp.dot(wim_ref[s], xcat, preferred_element_type=jnp.float32))
        if s >= 1:
            pre = jnp.dot(prev_up.astype(BF16), down_ref[s - 1],
                          preferred_element_type=jnp.float32)
            merge = relu(mm(wam_ref[s - 1], merge) + mm(wap_ref[s - 1], pre)) + merge
        mb = relu(conv3x3(merge, wc3_ref[3 * s], tmask, bin_))
        mb = relu(conv3x3(mb, wc3_ref[3 * s + 1], tmask, bin_))
        merge = mb + merge
        inner = relu(conv3x3(merge, wc3_ref[3 * s + 2], tmask, bin_))
        inner_ref[s] = mm(wcls_ref[s], inner) + bcls_ref[s]          # aux head (unused in eval)
        prev_up = merge if bin_ == FEAT_HW else jnp.dot(
            merge.astype(BF16), up_ref[s - 1], preferred_element_type=jnp.float32)
        pyr.append(prev_up)

    # ---- head: res1 -> res2(+residual) -> cls ---------------------------------
    tmask8 = tap_ref[0]
    qf = relu(mm(wres1_ref[...], jnp.concatenate(pyr, axis=0)))
    rr = relu(conv3x3(qf, wc3_ref[9], tmask8, FEAT_HW))
    rr = relu(conv3x3(rr, wc3_ref[10], tmask8, FEAT_HW))
    qf = rr + qf
    o = relu(conv3x3(qf, wc3_ref[11], tmask8, FEAT_HW))
    out_ref[...] = mm(wcls_ref[3], o) + bcls_ref[3]


# ----------------------------- host-side constants -----------------------------
def _interp1d(src, dst):
    """align_corners=True bilinear 1-D interpolation matrix (src, dst)."""
    m = np.zeros((src, dst), np.float32)
    if dst == 1:
        m[0, 0] = 1.0
        return m
    for o in range(dst):
        pos = o * (src - 1) / (dst - 1)
        y0 = min(int(np.floor(pos)), src - 1)
        y1 = min(y0 + 1, src - 1)
        wy = pos - y0
        m[y0, o] += 1.0 - wy
        m[y1, o] += wy
    return m


def _spatial_interp(batch, src, dst, lanes):
    """Block-diag (over batch) align-corners bilinear (src,src)->(dst,dst) on the
    channel-major padded-lane layout."""
    w1 = _interp1d(src, dst)
    m = np.zeros((lanes, lanes), np.float32)
    for b in range(batch):
        for hs in range(src):
            for ws in range(src):
                ps = b * src * src + hs * src + ws
                for hd in range(dst):
                    for wd in range(dst):
                        m[ps, b * dst * dst + hd * dst + wd] = w1[hs, hd] * w1[ws, wd]
    return m


def _pool_mat(batch, src, dst, lanes):
    """Block-diag adaptive average pooling (src,src)->(dst,dst) matrix."""
    m = np.zeros((lanes, lanes), np.float32)
    for b in range(batch):
        for hd in range(dst):
            h0, h1 = (hd * src) // dst, -((-(hd + 1) * src) // dst)
            for wd in range(dst):
                w0, w1 = (wd * src) // dst, -((-(wd + 1) * src) // dst)
                val = 1.0 / ((h1 - h0) * (w1 - w0))
                for hs in range(h0, h1):
                    for ws in range(w0, w1):
                        m[b * src * src + hs * src + ws,
                          b * dst * dst + hd * dst + wd] = val
    return m


def _tap_masks(batch, wb, lanes):
    """(9, lanes) 0/1 validity masks per conv tap (dy,dx); zero on pad lanes."""
    m = np.zeros((9, lanes), np.float32)
    k = 0
    for dy in (-1, 0, 1):
        for dx in (-1, 0, 1):
            for b in range(batch):
                for hh in range(wb):
                    for ww in range(wb):
                        if 0 <= hh + dy < wb and 0 <= ww + dx < wb:
                            m[k, b * wb * wb + hh * wb + ww] = 1.0
            k += 1
    return m


def _batch_sel(batch, wb, lanes):
    s = np.zeros((batch, lanes), np.float32)
    for b in range(batch):
        s[b, b * wb * wb:(b + 1) * wb * wb] = 1.0
    return s


def _block_mask(batch, lanes):
    m = np.full((lanes, lanes), -1e30, np.float32)
    for b in range(batch):
        m[b * HW:(b + 1) * HW, b * HW:(b + 1) * HW] = 0.0
    return m


# ----------------------------- parameters -------------------------------------
def init_params(key):
    keys = iter(jax.random.split(key, 64))

    def w(shape, scale=0.1):
        return jax.random.normal(next(keys), shape, jnp.float32) * scale

    p = {}
    p['backbone'] = {'w2': w((C2, 3)), 'w3': w((C3, C2)), 'w4': w((C4, C3))}
    p['down_query'] = w((REDUCE_DIM, FEA_DIM))
    p['down_supp'] = w((REDUCE_DIM, FEA_DIM))
    p['init_merge'] = [w((REDUCE_DIM, REDUCE_DIM * 2 + 1)) for _ in PPM_SCALES]
    p['alpha'] = [w((REDUCE_DIM, REDUCE_DIM * 2)) for _ in range(len(PPM_SCALES) - 1)]
    p['beta'] = [(w((REDUCE_DIM, REDUCE_DIM, 3, 3)),
                  w((REDUCE_DIM, REDUCE_DIM, 3, 3))) for _ in PPM_SCALES]
    p['inner_cls'] = [{'w1': w((REDUCE_DIM, REDUCE_DIM, 3, 3)),
                       'w2': w((CLASSES, REDUCE_DIM)),
                       'b2': w((CLASSES,))} for _ in PPM_SCALES]
    p['res1'] = w((REDUCE_DIM, REDUCE_DIM * len(PPM_SCALES)))
    p['res2'] = (w((REDUCE_DIM, REDUCE_DIM, 3, 3)), w((REDUCE_DIM, REDUCE_DIM, 3, 3)))
    p['cls_w1'] = w((REDUCE_DIM, REDUCE_DIM, 3, 3))
    p['cls_w2'] = w((CLASSES, REDUCE_DIM))
    p['cls_b2'] = w((CLASSES,))
    return p


def prepare(params, batch, h_in, w_in):
    """Pack kernel-ready weights (bf16, tap-fused 3x3) and precomputed
    interpolation / pooling / mask constants.  Called ONCE, outside jit."""
    lanes = batch * HW
    h_out = (h_in - 1) // 8 * ZOOM_FACTOR + 1
    w_out = (w_in - 1) // 8 * ZOOM_FACTOR + 1
    R = REDUCE_DIM

    def bf(a):
        return jnp.asarray(a, BF16)

    def w3x3(wt):   # (Cout, Cin, 3, 3) -> (Cout, 9*Cin), tap-major column blocks
        co, ci = wt.shape[0], wt.shape[1]
        return jnp.transpose(wt, (0, 2, 3, 1)).reshape(co, 9 * ci)

    c3 = []
    for s in range(len(PPM_SCALES)):
        c3 += [w3x3(params['beta'][s][0]), w3x3(params['beta'][s][1]),
               w3x3(params['inner_cls'][s]['w1'])]
    c3 += [w3x3(params['res2'][0]), w3x3(params['res2'][1]), w3x3(params['cls_w1'])]

    small = PPM_SCALES[1:]
    return dict(
        wb2=bf(params['backbone']['w2']),
        wb3=bf(params['backbone']['w3']),
        wb4=bf(params['backbone']['w4']),
        wdq=bf(params['down_query']),
        wds=bf(params['down_supp']),
        wim=bf(jnp.stack(params['init_merge'])),
        wam=bf(jnp.stack([a[:, :R] for a in params['alpha']])),
        wap=bf(jnp.stack([a[:, R:] for a in params['alpha']])),
        wc3=bf(jnp.stack(c3)),
        wres1=bf(params['res1']),
        wcls=bf(jnp.stack([params['inner_cls'][s]['w2'] for s in range(len(PPM_SCALES))]
                          + [params['cls_w2']])),
        bcls=jnp.stack([params['inner_cls'][s]['b2'].reshape(CLASSES, 1)
                        for s in range(len(PPM_SCALES))]
                       + [params['cls_b2'].reshape(CLASSES, 1)]).astype(jnp.float32),
        tap=jnp.asarray(np.stack([_tap_masks(batch, bn, lanes) for bn in PPM_SCALES])),
        pool=bf(np.stack([_pool_mat(batch, FEAT_HW, bn, lanes) for bn in small])),
        down=bf(np.stack([_spatial_interp(batch, FEAT_HW, bn, lanes) for bn in small])),
        up=bf(np.stack([_spatial_interp(batch, bn, FEAT_HW, lanes) for bn in small])),
        sel=jnp.asarray(np.stack([_batch_sel(batch, bn, lanes) for bn in PPM_SCALES])),
        blk=jnp.asarray(_block_mask(batch, lanes)),
        mask_ih=jnp.asarray(_interp1d(h_in, FEAT_HW)),
        mask_iw=jnp.asarray(_interp1d(w_in, FEAT_HW)),
        zoom_h=jnp.asarray(_interp1d(FEAT_HW, h_out)),
        zoom_w=jnp.asarray(_interp1d(FEAT_HW, w_out)),
    )


# ----------------------------- PFENet forward (eval) --------------------------
def pfenet_forward(packed, x, s_x, s_y):
    batch = x.shape[0]
    shot = s_y.shape[1]
    assert (x.shape[2] - 1) % 8 == 0 and (x.shape[3] - 1) % 8 == 0
    h = (x.shape[2] - 1) // 8 * ZOOM_FACTOR + 1
    w = (x.shape[3] - 1) // 8 * ZOOM_FACTOR + 1
    assert packed['zoom_h'].shape == (FEAT_HW, h)
    assert packed['zoom_w'].shape == (FEAT_HW, w)
    lanes = batch * HW
    groups = 1 + shot

    # --- input glue (plain JAX, gather-free) ----------------------------------
    imgs = jnp.concatenate([x[None], jnp.transpose(s_x, (1, 0, 2, 3, 4))], axis=0)
    feat_in = imgs[:, :, :, :4 * FEAT_HW:4, :4 * FEAT_HW:4]          # (G,B,3,8,8)
    x_gcm = jnp.transpose(feat_in, (0, 2, 1, 3, 4)).reshape(groups, 3, lanes).astype(BF16)

    mask = (s_y == 1).astype(jnp.float32)                            # (B,shot,Hin,Win)
    mask8 = jnp.einsum('Hh,bsHW,Ww->bshw', packed['mask_ih'], mask, packed['mask_iw'],
                       precision=lax.Precision.HIGHEST)
    mask8 = jnp.transpose(mask8, (1, 0, 2, 3)).reshape(shot, 1, lanes)

    args = (x_gcm, mask8, packed['wb2'], packed['wb3'], packed['wb4'],
            packed['wdq'], packed['wds'], packed['wim'], packed['wam'],
            packed['wap'], packed['wc3'], packed['wres1'], packed['wcls'],
            packed['bcls'], packed['tap'], packed['pool'], packed['down'],
            packed['up'], packed['sel'], packed['blk'])

    out_cm, _inner_aux = pl.pallas_call(
        _pfenet_kernel,
        out_shape=(jax.ShapeDtypeStruct((CLASSES, lanes), jnp.float32),
                   jax.ShapeDtypeStruct((len(PPM_SCALES), CLASSES, lanes), jnp.float32)),
        grid=(1,),
        in_specs=[_full(a.shape) for a in args],
        out_specs=(_full((CLASSES, lanes)),
                   _full((len(PPM_SCALES), CLASSES, lanes))),
        compiler_params=pltpu.CompilerParams(dimension_semantics=("arbitrary",)),
    )(*args)

    # --- final align-corners zoom 8x8 -> (h, w): separable matmuls ------------
    out8 = jnp.transpose(out_cm.reshape(CLASSES, batch, FEAT_HW, FEAT_HW), (1, 0, 2, 3))
    out = jnp.einsum('HY,bcHW,WX->bcYX', packed['zoom_h'], out8, packed['zoom_w'],
                     precision=lax.Precision.HIGHEST)
    return out


# ----------------------------- main --------------------------------------------
if __name__ == "__main__":
    key = jax.random.PRNGKey(0)
    kp, kx, ks, ky = jax.random.split(key, 4)
    params = init_params(kp)

    B, shot, Hin, Win = 2, 1, 33, 33     # (Hin - 1) % 8 == 0
    x = jax.random.normal(kx, (B, 3, Hin, Win), jnp.float32)
    s_x = jax.random.normal(ks, (B, shot, 3, Hin, Win), jnp.float32)
    s_y = jax.random.randint(ky, (B, shot, Hin, Win), 0, 2).astype(jnp.float32)

    _roll_factor()                        # resolve pltpu.roll direction once
    packed = prepare(params, B, Hin, Win)

    fwd = jax.jit(pfenet_forward)
    out = fwd(packed, x, s_x, s_y)
    jax.block_until_ready(out)
    assert out.shape == (B, CLASSES, Hin, Win)
    print("KERNEL_OK")
</pallas_src>

<mosaic_0001>
module attributes {stable_mosaic.version = 11 : i64} {
  func.func @_probe_kernel(%arg0: memref<1x128xf32, #tpu.memory_space<vmem>>, %arg1: memref<1x128xf32, #tpu.memory_space<vmem>>) attributes {dimension_semantics = [], scalar_prefetch = 0 : i64, scratch_operands = 0 : i64, tpu.core_type = #tpu.core_type<tc>} {
    %c0 = arith.constant 0 : index
    %c0_0 = arith.constant 0 : index
    %0 = vector.load %arg0[%c0, %c0_0] : memref<1x128xf32, #tpu.memory_space<vmem>>, vector<1x128xf32>
    %c1_i32 = arith.constant 1 : i32
    %1 = tpu.dynamic_rotate %0 by %c1_i32 dim 1 : vector<1x128xf32>, i32 -> vector<1x128xf32>
    %c0_1 = arith.constant 0 : index
    %c0_2 = arith.constant 0 : index
    %2 = vector.load %arg1[%c0_1, %c0_2] : memref<1x128xf32, #tpu.memory_space<vmem>>, vector<1x128xf32>
    tpu.vector_store %arg1[%c0_1, %c0_2], %1 {strides = array<i32>} : memref<1x128xf32, #tpu.memory_space<vmem>>, vector<1x128xf32>,
    return
  }
}

</mosaic_0001>

<llo_original>
// kernel: tpu_custom_call.1
$region0: #{tpu_custom_call.1}
  #allocation0 [shape = 'u32[]', space=smem, size = 0x4, offset = 0x4, fixed_abs, tag = 'smem constant byte address 0x4 - core index']
  #allocation1 [shape = 'u32[144,128]{1,0:T(1,128)}', space=vmem, size = 0x12000, scoped, tag = 'internal scratch']
  %s0 = inlined_call_operand.hbm [shape: f32[1,128], index: 0, kind: input, shape index: {}]
  %s1 = inlined_call_operand.hbm [shape: f32[1,128], index: 1, kind: output, shape index: {}]
  %s2 = sld [smem:[#allocation0]]
  $region18: #{tpu_custom_call.1} parent=0
    _
  %s4 = ssub.s32 1, %s2
  %s5 = scalar_select 0, %s4, %s2
  $region1: #{tpu_custom_call.1} parent=0
    #allocation2 [shape = 'u8[512]{0}', space=vmem, size = 0x400, scoped, tag = 'input window, operand 0, single buffered']
    #allocation3 [shape = 's32[1]{0}', space=sflag, size = 0x4, scoped, tag = 'scoped memory for tpu_custom_call.1']
    #allocation4 [shape = 's32[1]{0}', space=sflag, size = 0x4, scoped, tag = 'scoped memory for tpu_custom_call.1']
    #allocation5 [shape = 'u8[512]{0}', space=vmem, size = 0x400, scoped, tag = 'output window, operand 0, single buffered']
    %6 = vsyncpa [#allocation3], 0
    %7 = vsyncpa [#allocation4], 0
    // Predicated region
    $region2: #{tpu_custom_call.1} parent=1 // pred_check
      _
    $region3: #{tpu_custom_call.1} parent=1 // pred_check_branch
      %9 = sbr.rel (0) target = $region5
    $region4: #{tpu_custom_call.1} parent=1 // pred_region
      %s11 = ssub.s32 16, 16
      %12 = vsyncadd [#allocation3], %s11
      %s14 = sshll.u32 [#allocation2], 4
      %s15 = int_to_ptr.vmem [resolvable:$true] %s14
      %17 = dma.hbm_to_vmem [thread:$0]  %s0, 16, %s15, [#allocation3]
    $region5: #{tpu_custom_call.1} parent=1 // pred_fallthru
      _
    // Predicated region
    $region6: #{tpu_custom_call.1} parent=1 // pred_check
      _
    $region7: #{tpu_custom_call.1} parent=1 // pred_check_branch
      %19 = sbr.rel (0) target = $region9
    $region8: #{tpu_custom_call.1} parent=1 // pred_region
      %20 = dma.done [#allocation3], 16
    $region9: #{tpu_custom_call.1} parent=1 // pred_fallthru
      _
    %v21 = vld [vmem:[#allocation2] sm:$0x1]
    %22 = vrot.lane.b32.xlu0 %v21, 1
    %v23 = vpop.permute.xlu0 %22
    %24 = vst [vmem:[#allocation5] sm:$0x1] %v23
    // Predicated region
    $region10: #{tpu_custom_call.1} parent=1 // pred_check
      _
    $region11: #{tpu_custom_call.1} parent=1 // pred_check_branch
      %26 = sbr.rel (0) target = $region13
    $region12: #{tpu_custom_call.1} parent=1 // pred_region
      %s28 = ssub.s32 16, 16
      %29 = vsyncadd [#allocation4], %s28
      %s31 = sshll.u32 [#allocation5], 4
      %s32 = int_to_ptr.vmem [resolvable:$true] %s31
      %34 = dma.vmem_to_hbm [thread:$0]  %s32, 16, %s1, [#allocation4]
    $region13: #{tpu_custom_call.1} parent=1 // pred_fallthru
      _
    // Predicated region
    $region14: #{tpu_custom_call.1} parent=1 // pred_check
      _
    $region15: #{tpu_custom_call.1} parent=1 // pred_check_branch
      %36 = sbr.rel (0) target = $region17
    $region16: #{tpu_custom_call.1} parent=1 // pred_region
      %37 = dma.done [#allocation4], 16
    $region17: #{tpu_custom_call.1} parent=1 // pred_fallthru
      _
    %38 = vsyncpa [#allocation3], 1
    %39 = vsyncpa [#allocation4], 1

</llo_original>
